<compile_context>
chip_gen: v7x
topology: tpu7x:2x2x1
jax: 0.10.0
libtpu: 0.0.40
codegen_flags: <defaults>
</compile_context>

<pallas_src>
import numpy as np
import jax
import jax.numpy as jnp
from jax.experimental import pallas as pl

# ----------------------- problem configuration (small) -----------------------
B = 2          # batch
CIN = 4        # in_channels
COUT = 4       # out_channels (must equal CIN; the original einsum requires it)
M1 = 4         # modes1
M2 = 4         # modes2
NX = 16        # spatial size along dim -2 (the "X" axis of the module)
NT = 16        # spatial size along dim -1 (the "T" axis of the module)


# ------------------------------- Pallas kernel -------------------------------
def _pr2d_kernel(a_mm_ref,   # (2B, Ci*S)        bf16  [a_re ; a_im], cols = (i, s)
                 a_r1_ref,   # (2*Ci, B*Co, S)   f32   [re_0..re_{Ci-1} ; im_0..im_{Ci-1}], alpha repl. over Co
                 hs_ref,     # (2*Ci, B*Co, S)   f32   Hsum replicated over B, same layout
                 h_ref,      # (Ci*S, 2*Co*M)    bf16  [Re(Hw) | Im(Hw)] in matmul layout
                 t_ref,      # (2*Ci*M, Co*S)    bf16  [Re(term3) ; -Im(term3)] / (NX*NT)
                 r1_ref,     # (B*Co, 2*S)       f32   [re | im] of output_residue1
                 x2_ref):    # (B, Co*S)         f32   real(x2), final scale included
    f32 = jnp.float32
    twoB = a_mm_ref.shape[0]
    Bb = twoB // 2
    CM = h_ref.shape[1] // 2                      # Co * M
    Ci = a_r1_ref.shape[0] // 2
    BCo, S = a_r1_ref.shape[1], a_r1_ref.shape[2]

    # ---- r2: ONE fused MXU sweep for all four real matmuls of the complex product ----
    # P = [a_re ; a_im] @ [h_re | h_im]  ->  [[Prr, Pri], [Pir, Pii]]
    P = jnp.dot(a_mm_ref[...], h_ref[...], preferred_element_type=f32)    # (2B, 2*CM)
    r2_re = P[0:Bb, 0:CM] - P[Bb:twoB, CM:2 * CM]
    r2_im = P[0:Bb, CM:2 * CM] + P[Bb:twoB, 0:CM]

    # ---- x2: ONE fused MXU sweep; minus sign and 1/(NX*NT) are baked into t_ref ----
    lhs2 = jnp.concatenate([r2_re, r2_im], axis=-1).astype(t_ref.dtype)   # (B, 2*CM)
    x2_ref[...] = jnp.dot(lhs2, t_ref[...], preferred_element_type=f32)   # (B, Co*S)

    # ---- r1: f32 VPU complex accumulate over input channels; rows (b,k) fill 8 sublanes ----
    acc_re = jnp.zeros((BCo, S), f32)
    acc_im = jnp.zeros((BCo, S), f32)
    for i in range(Ci):                           # Ci = 4, unrolled at trace time
        ar = a_r1_ref[i]
        ai = a_r1_ref[Ci + i]
        hr = hs_ref[i]
        hi = hs_ref[Ci + i]
        acc_re = acc_re + ar * hr - ai * hi
        acc_im = acc_im + ar * hi + ai * hr
    # lane-dense writeback: [re | im] at 128-aligned lane offsets
    r1_ref[:, 0:S] = acc_re
    r1_ref[:, S:2 * S] = acc_im


# ------------------ weight-only precompute (once per weight update) ------------------
def precompute_pr2d_weights(w_pole1, w_pole2, w_residue, T_arr, X_arr, batch):
    Ci, Co, m1 = w_pole1.shape
    m2 = w_pole2.shape[2]
    NXs = X_arr.shape[1]
    NTs = T_arr.shape[1]
    S, M = NXs * NTs, m1 * m2
    assert Ci == Co, "original einsum 'kbpq,bipqzx->kizx' requires in==out channels"
    assert S % 128 == 0, "S = NX*NT must be a multiple of 128 for lane-aligned stores"

    ty, tx = X_arr, T_arr                                  # module: ty = X, tx = T
    dty = float(ty[0, 1] - ty[0, 0])
    dtx = float(tx[0, 1] - tx[0, 0])
    lam1 = (jnp.fft.fftfreq(NXs, d=dty) * (2.0 * np.pi) * 1j).astype(jnp.complex64)   # (NX,)
    lam2 = (jnp.fft.fftfreq(NTs, d=dtx) * (2.0 * np.pi) * 1j).astype(jnp.complex64)   # (NT,)

    # Hw[o,x,i,k,p,q] = residue[i,k,p,q] / ((lam1[o]-pole1[i,k,p]) * (lam2[x]-pole2[i,k,q]))
    d1 = lam1[:, None, None, None] - w_pole1[None]                         # (NX,Ci,Co,M1)
    d2 = lam2[:, None, None, None] - w_pole2[None]                         # (NT,Ci,Co,M2)
    denom = d1[:, None, :, :, :, None] * d2[None, :, :, :, None, :]        # (NX,NT,Ci,Co,M1,M2)
    Hw = w_residue[None, None] / denom

    # r2 matmul weight: rows (i,s) contract, cols (k,m); [Re | Im] stacked -> one MXU sweep
    h2 = jnp.transpose(Hw, (2, 0, 1, 3, 4, 5)).reshape(Ci * S, Co * M)
    h_stack = jnp.concatenate([jnp.real(h2), jnp.imag(h2)], axis=1).astype(jnp.bfloat16)

    # r1 weight: Hsum[i,k,s] = sum_m Hw, replicated over the batch so kernel rows are (b*Co + k)
    hs = jnp.transpose(jnp.sum(Hw, axis=(4, 5)), (2, 3, 0, 1)).reshape(Ci, Co, S)
    hs_rep = jnp.broadcast_to(hs[:, None, :, :], (Ci, batch, Co, S)).reshape(Ci, batch * Co, S)
    hs_stack = jnp.concatenate([jnp.real(hs_rep), jnp.imag(hs_rep)],
                               axis=0).astype(jnp.float32)                 # (2*Ci, B*Co, S)

    # x2 matmul weight: term3 in matmul layout, with the minus sign for Re(complex product)
    # and the 1/(NX*NT) output normalization baked in
    ty_c = ty[0].astype(jnp.complex64)                                     # (NX,)
    tx_c = tx[0].astype(jnp.complex64)                                     # (NT,)
    e1 = jnp.exp(w_pole1[..., None] * ty_c)                                # (Ci,Co,M1,NX)
    e2 = jnp.exp(w_pole2[..., None] * tx_c)                                # (Ci,Co,M2,NT)
    t3 = e1[:, :, :, None, :, None] * e2[:, :, None, :, None, :]           # (Ci,Co,M1,M2,NX,NT)
    t3_2 = jnp.transpose(t3, (0, 2, 3, 1, 4, 5)).reshape(Ci * M, Co * S)   # rows (c,m), cols (j,s)
    scale = 1.0 / (NXs * NTs)
    t_stack = (jnp.concatenate([jnp.real(t3_2), -jnp.imag(t3_2)], axis=0)
               * scale).astype(jnp.bfloat16)                               # (2*Ci*M, Co*S)

    return hs_stack, h_stack, t_stack


# ------------------------------ forward wrapper -------------------------------
@jax.jit
def pr2d_forward_pallas(x, hs_stack, h_stack, t_stack):
    Bs, Ci, NXs, NTs = x.shape
    S = NXs * NTs
    Co = hs_stack.shape[1] // Bs
    assert S % 128 == 0, "S = NX*NT must be a multiple of 128 for lane-aligned stores"

    # TODO(synk): fft2/ifft2 have no Pallas TPU primitive; they remain in plain JAX.
    alpha = jnp.fft.fft2(x, axes=(-2, -1))                 # (B, Ci, NX, NT) complex64
    a = alpha.reshape(Bs, Ci, S)
    a_re = jnp.real(a).astype(jnp.float32)
    a_im = jnp.imag(a).astype(jnp.float32)

    # MXU activation: batch folded into the matmul M-dim, re/im stacked along rows, bf16.
    a_mm = jnp.concatenate([a_re.reshape(Bs, Ci * S),
                            a_im.reshape(Bs, Ci * S)], axis=0).astype(jnp.bfloat16)   # (2B, Ci*S)

    # r1 activation: replicate over Co so kernel rows (b*Co + k) use all 8 sublanes (f32 VPU path).
    def rep(v):                                            # (B, Ci, S) -> (Ci, B*Co, S)
        return jnp.broadcast_to(jnp.transpose(v, (1, 0, 2))[:, :, None, :],
                                (Ci, Bs, Co, S)).reshape(Ci, Bs * Co, S)
    a_r1 = jnp.concatenate([rep(a_re), rep(a_im)], axis=0)  # (2*Ci, B*Co, S) f32

    # Grid-less single launch: everything (<1 MiB) is VMEM-resident, no pipeline bookkeeping.
    # (On v7x with large batch, add a 'parallel' batch grid axis; at B=2 it is pure overhead.)
    r1_out, x2_flat = pl.pallas_call(
        _pr2d_kernel,
        out_shape=(jax.ShapeDtypeStruct((Bs * Co, 2 * S), jnp.float32),
                   jax.ShapeDtypeStruct((Bs, Co * S), jnp.float32)),
    )(a_mm, a_r1, hs_stack, h_stack, t_stack)

    residue1 = (r1_out[:, :S] + 1j * r1_out[:, S:]).reshape(Bs, Co, NXs, NTs)
    x1 = jnp.real(jnp.fft.ifft2(residue1, s=(NXs, NTs), axes=(-2, -1)))
    x2 = x2_flat.reshape(Bs, Co, NXs, NTs)                 # 1/(NX*NT) already folded into t_stack
    return x1 + x2


# --------------------------- pure-JAX reference -------------------------------
def pr2d_reference(x, w_pole1, w_pole2, w_residue, T_arr, X_arr):
    Bs, Ci, NXs, NTs = x.shape
    ty, tx = X_arr, T_arr
    dty = float(ty[0, 1] - ty[0, 0])
    dtx = float(tx[0, 1] - tx[0, 0])
    alpha = jnp.fft.fft2(x, axes=(-2, -1))
    lam1 = (jnp.fft.fftfreq(NXs, d=dty) * 2 * np.pi * 1j)[:, None, None, None]
    lam2 = (jnp.fft.fftfreq(NTs, d=dtx) * 2 * np.pi * 1j)[:, None, None, None]
    hp = jax.lax.Precision.HIGHEST
    term1 = 1.0 / jnp.einsum('pbix,qbik->pqbixk', lam1 - w_pole1, lam2 - w_pole2)
    Hw = jnp.einsum('bixk,pqbixk->pqbixk', w_residue, term1)
    out1 = jnp.einsum('biox,oxikpq->bkox', alpha, Hw, precision=hp)
    out2 = jnp.einsum('biox,oxikpq->bkpq', alpha, Hw, precision=hp)
    x1 = jnp.real(jnp.fft.ifft2(out1, s=(NXs, NTs), axes=(-2, -1)))
    t1 = jnp.einsum('bip,kz->bipz', w_pole1, ty.astype(jnp.complex64))
    t2 = jnp.einsum('biq,kx->biqx', w_pole2, tx.astype(jnp.complex64))
    t3 = jnp.einsum('bipz,biqx->bipqzx', jnp.exp(t1), jnp.exp(t2))
    x2 = jnp.real(jnp.einsum('kbpq,bipqzx->kizx', out2, t3, precision=hp))
    x2 = x2 / NTs / NXs
    return x1 + x2


# ------------------------------------ main ------------------------------------
if __name__ == "__main__":
    key = jax.random.PRNGKey(0)
    kx, k1, k2, k3, k4, k5, k6 = jax.random.split(key, 7)

    x = jax.random.normal(kx, (B, CIN, NX, NT), dtype=jnp.float32)

    # deterministic "rand" init matching the module: scale * rand(cfloat)
    scale = 1.0 / (CIN * COUT)
    w_pole1 = (scale * (jax.random.uniform(k1, (CIN, COUT, M1))
                        + 1j * jax.random.uniform(k2, (CIN, COUT, M1)))).astype(jnp.complex64)
    w_pole2 = (scale * (jax.random.uniform(k3, (CIN, COUT, M2))
                        + 1j * jax.random.uniform(k4, (CIN, COUT, M2)))).astype(jnp.complex64)
    w_residue = (scale * (jax.random.uniform(k5, (CIN, COUT, M1, M2))
                          + 1j * jax.random.uniform(k6, (CIN, COUT, M1, M2)))).astype(jnp.complex64)

    # synthetic stand-ins for the script-level globals T (time grid) and X (epoch grid)
    T_arr = jnp.linspace(0.0, 1.0, NT, dtype=jnp.float32).reshape(1, NT)
    X_arr = jnp.arange(NX, dtype=jnp.float32).reshape(1, NX)

    # weight-only precompute (Hw, Hsum, term3, bf16 casts, replication): once per weight update
    weights = precompute_pr2d_weights(w_pole1, w_pole2, w_residue, T_arr, X_arr, B)

    out = pr2d_forward_pallas(x, *weights)
    out = jax.block_until_ready(out)

    ref = pr2d_reference(x, w_pole1, w_pole2, w_residue, T_arr, X_arr)
    ref = jax.block_until_ready(ref)

    assert out.shape == (B, COUT, NX, NT)
    assert bool(jnp.all(jnp.isfinite(out)))
    # bf16 MXU path with f32 accumulation: relative L2 error is well below 1e-2
    rel_err = float(jnp.linalg.norm(out - ref) / jnp.linalg.norm(ref))
    assert rel_err < 1e-2, f"mismatch: rel_l2={rel_err}"

    print("KERNEL_OK")
</pallas_src>

<mosaic_0001>
module attributes {stable_mosaic.version = 11 : i64} {
  func.func @_pr2d_kernel(%arg0: memref<4x1024xbf16, #tpu.memory_space<vmem>>, %arg1: memref<8x8x256xf32, #tpu.memory_space<vmem>>, %arg2: memref<8x8x256xf32, #tpu.memory_space<vmem>>, %arg3: memref<1024x128xbf16, #tpu.memory_space<vmem>>, %arg4: memref<128x1024xbf16, #tpu.memory_space<vmem>>, %arg5: memref<8x512xf32, #tpu.memory_space<vmem>>, %arg6: memref<2x1024xf32, #tpu.memory_space<vmem>>) attributes {dimension_semantics = [], scalar_prefetch = 0 : i64, scratch_operands = 0 : i64, tpu.core_type = #tpu.core_type<tc>} {
    %c0 = arith.constant 0 : index
    %c0_0 = arith.constant 0 : index
    %0 = vector.load %arg0[%c0, %c0_0] : memref<4x1024xbf16, #tpu.memory_space<vmem>>, vector<4x1024xbf16>
    %c0_1 = arith.constant 0 : index
    %c0_2 = arith.constant 0 : index
    %1 = vector.load %arg3[%c0_1, %c0_2] : memref<1024x128xbf16, #tpu.memory_space<vmem>>, vector<1024x128xbf16>
    %cst = arith.constant dense<0.000000e+00> : vector<4x128xf32>
    %2 = tpu.matmul %0, %1, %cst {dimension_numbers = #tpu.dot_dimension_numbers<[1], [0], [0], [1], [0, 0, 1, 1], [], []>} : vector<4x1024xbf16>, vector<1024x128xbf16>, vector<4x128xf32> -> vector<4x128xf32>
    %3 = vector.extract_strided_slice %2 {offsets = [0, 0], sizes = [2, 64], strides = [1, 1]} : vector<4x128xf32> to vector<2x64xf32>
    %4 = vector.extract_strided_slice %2 {offsets = [2, 64], sizes = [2, 64], strides = [1, 1]} : vector<4x128xf32> to vector<2x64xf32>
    %5 = arith.subf %3, %4 : vector<2x64xf32>
    %6 = vector.extract_strided_slice %2 {offsets = [0, 64], sizes = [2, 64], strides = [1, 1]} : vector<4x128xf32> to vector<2x64xf32>
    %7 = vector.extract_strided_slice %2 {offsets = [2, 0], sizes = [2, 64], strides = [1, 1]} : vector<4x128xf32> to vector<2x64xf32>
    %8 = arith.addf %6, %7 : vector<2x64xf32>
    %9 = tpu.concatenate %5, %8 in 1 : vector<2x64xf32>, vector<2x64xf32> -> vector<2x128xf32>
    %10 = arith.truncf %9 : vector<2x128xf32> to vector<2x128xbf16>
    %c0_3 = arith.constant 0 : index
    %c0_4 = arith.constant 0 : index
    %11 = vector.load %arg4[%c0_3, %c0_4] : memref<128x1024xbf16, #tpu.memory_space<vmem>>, vector<128x1024xbf16>
    %cst_5 = arith.constant dense<0.000000e+00> : vector<2x1024xf32>
    %12 = tpu.matmul %10, %11, %cst_5 {dimension_numbers = #tpu.dot_dimension_numbers<[1], [0], [0], [1], [0, 0, 1, 1], [], []>} : vector<2x128xbf16>, vector<128x1024xbf16>, vector<2x1024xf32> -> vector<2x1024xf32>
    %c0_6 = arith.constant 0 : index
    %c0_7 = arith.constant 0 : index
    %13 = vector.load %arg6[%c0_6, %c0_7] : memref<2x1024xf32, #tpu.memory_space<vmem>>, vector<2x1024xf32>
    tpu.vector_store %arg6[%c0_6, %c0_7], %12 {strides = array<i32>} : memref<2x1024xf32, #tpu.memory_space<vmem>>, vector<2x1024xf32>,
    %cst_8 = arith.constant 0.000000e+00 : f32
    %14 = vector.broadcast %cst_8 : f32 to vector<8x256xf32>
    %cst_9 = arith.constant 0.000000e+00 : f32
    %15 = vector.broadcast %cst_9 : f32 to vector<8x256xf32>
    %c0_10 = arith.constant 0 : index
    %c0_11 = arith.constant 0 : index
    %c0_12 = arith.constant 0 : index
    %16 = vector.load %arg1[%c0_10, %c0_11, %c0_12] : memref<8x8x256xf32, #tpu.memory_space<vmem>>, vector<1x8x256xf32>
    %17 = vector.shape_cast %16 : vector<1x8x256xf32> to vector<8x256xf32>
    %c4 = arith.constant 4 : index
    %c0_13 = arith.constant 0 : index
    %c0_14 = arith.constant 0 : index
    %18 = vector.load %arg1[%c4, %c0_13, %c0_14] : memref<8x8x256xf32, #tpu.memory_space<vmem>>, vector<1x8x256xf32>
    %19 = vector.shape_cast %18 : vector<1x8x256xf32> to vector<8x256xf32>
    %c0_15 = arith.constant 0 : index
    %c0_16 = arith.constant 0 : index
    %c0_17 = arith.constant 0 : index
    %20 = vector.load %arg2[%c0_15, %c0_16, %c0_17] : memref<8x8x256xf32, #tpu.memory_space<vmem>>, vector<1x8x256xf32>
    %21 = vector.shape_cast %20 : vector<1x8x256xf32> to vector<8x256xf32>
    %c4_18 = arith.constant 4 : index
    %c0_19 = arith.constant 0 : index
    %c0_20 = arith.constant 0 : index
    %22 = vector.load %arg2[%c4_18, %c0_19, %c0_20] : memref<8x8x256xf32, #tpu.memory_space<vmem>>, vector<1x8x256xf32>
    %23 = vector.shape_cast %22 : vector<1x8x256xf32> to vector<8x256xf32>
    %24 = arith.mulf %17, %21 : vector<8x256xf32>
    %25 = arith.addf %14, %24 : vector<8x256xf32>
    %26 = arith.mulf %19, %23 : vector<8x256xf32>
    %27 = arith.subf %25, %26 : vector<8x256xf32>
    %28 = arith.mulf %17, %23 : vector<8x256xf32>
    %29 = arith.addf %15, %28 : vector<8x256xf32>
    %30 = arith.mulf %19, %21 : vector<8x256xf32>
    %31 = arith.addf %29, %30 : vector<8x256xf32>
    %c1 = arith.constant 1 : index
    %c0_21 = arith.constant 0 : index
    %c0_22 = arith.constant 0 : index
    %32 = vector.load %arg1[%c1, %c0_21, %c0_22] : memref<8x8x256xf32, #tpu.memory_space<vmem>>, vector<1x8x256xf32>
    %33 = vector.shape_cast %32 : vector<1x8x256xf32> to vector<8x256xf32>
    %c5 = arith.constant 5 : index
    %c0_23 = arith.constant 0 : index
    %c0_24 = arith.constant 0 : index
    %34 = vector.load %arg1[%c5, %c0_23, %c0_24] : memref<8x8x256xf32, #tpu.memory_space<vmem>>, vector<1x8x256xf32>
    %35 = vector.shape_cast %34 : vector<1x8x256xf32> to vector<8x256xf32>
    %c1_25 = arith.constant 1 : index
    %c0_26 = arith.constant 0 : index
    %c0_27 = arith.constant 0 : index
    %36 = vector.load %arg2[%c1_25, %c0_26, %c0_27] : memref<8x8x256xf32, #tpu.memory_space<vmem>>, vector<1x8x256xf32>
    %37 = vector.shape_cast %36 : vector<1x8x256xf32> to vector<8x256xf32>
    %c5_28 = arith.constant 5 : index
    %c0_29 = arith.constant 0 : index
    %c0_30 = arith.constant 0 : index
    %38 = vector.load %arg2[%c5_28, %c0_29, %c0_30] : memref<8x8x256xf32, #tpu.memory_space<vmem>>, vector<1x8x256xf32>
    %39 = vector.shape_cast %38 : vector<1x8x256xf32> to vector<8x256xf32>
    %40 = arith.mulf %33, %37 : vector<8x256xf32>
    %41 = arith.addf %27, %40 : vector<8x256xf32>
    %42 = arith.mulf %35, %39 : vector<8x256xf32>
    %43 = arith.subf %41, %42 : vector<8x256xf32>
    %44 = arith.mulf %33, %39 : vector<8x256xf32>
    %45 = arith.addf %31, %44 : vector<8x256xf32>
    %46 = arith.mulf %35, %37 : vector<8x256xf32>
    %47 = arith.addf %45, %46 : vector<8x256xf32>
    %c2 = arith.constant 2 : index
    %c0_31 = arith.constant 0 : index
    %c0_32 = arith.constant 0 : index
    %48 = vector.load %arg1[%c2, %c0_31, %c0_32] : memref<8x8x256xf32, #tpu.memory_space<vmem>>, vector<1x8x256xf32>
    %49 = vector.shape_cast %48 : vector<1x8x256xf32> to vector<8x256xf32>
    %c6 = arith.constant 6 : index
    %c0_33 = arith.constant 0 : index
    %c0_34 = arith.constant 0 : index
    %50 = vector.load %arg1[%c6, %c0_33, %c0_34] : memref<8x8x256xf32, #tpu.memory_space<vmem>>, vector<1x8x256xf32>
    %51 = vector.shape_cast %50 : vector<1x8x256xf32> to vector<8x256xf32>
    %c2_35 = arith.constant 2 : index
    %c0_36 = arith.constant 0 : index
    %c0_37 = arith.constant 0 : index
    %52 = vector.load %arg2[%c2_35, %c0_36, %c0_37] : memref<8x8x256xf32, #tpu.memory_space<vmem>>, vector<1x8x256xf32>
    %53 = vector.shape_cast %52 : vector<1x8x256xf32> to vector<8x256xf32>
    %c6_38 = arith.constant 6 : index
    %c0_39 = arith.constant 0 : index
    %c0_40 = arith.constant 0 : index
    %54 = vector.load %arg2[%c6_38, %c0_39, %c0_40] : memref<8x8x256xf32, #tpu.memory_space<vmem>>, vector<1x8x256xf32>
    %55 = vector.shape_cast %54 : vector<1x8x256xf32> to vector<8x256xf32>
    %56 = arith.mulf %49, %53 : vector<8x256xf32>
    %57 = arith.addf %43, %56 : vector<8x256xf32>
    %58 = arith.mulf %51, %55 : vector<8x256xf32>
    %59 = arith.subf %57, %58 : vector<8x256xf32>
    %60 = arith.mulf %49, %55 : vector<8x256xf32>
    %61 = arith.addf %47, %60 : vector<8x256xf32>
    %62 = arith.mulf %51, %53 : vector<8x256xf32>
    %63 = arith.addf %61, %62 : vector<8x256xf32>
    %c3 = arith.constant 3 : index
    %c0_41 = arith.constant 0 : index
    %c0_42 = arith.constant 0 : index
    %64 = vector.load %arg1[%c3, %c0_41, %c0_42] : memref<8x8x256xf32, #tpu.memory_space<vmem>>, vector<1x8x256xf32>
    %65 = vector.shape_cast %64 : vector<1x8x256xf32> to vector<8x256xf32>
    %c7 = arith.constant 7 : index
    %c0_43 = arith.constant 0 : index
    %c0_44 = arith.constant 0 : index
    %66 = vector.load %arg1[%c7, %c0_43, %c0_44] : memref<8x8x256xf32, #tpu.memory_space<vmem>>, vector<1x8x256xf32>
    %67 = vector.shape_cast %66 : vector<1x8x256xf32> to vector<8x256xf32>
    %c3_45 = arith.constant 3 : index
    %c0_46 = arith.constant 0 : index
    %c0_47 = arith.constant 0 : index
    %68 = vector.load %arg2[%c3_45, %c0_46, %c0_47] : memref<8x8x256xf32, #tpu.memory_space<vmem>>, vector<1x8x256xf32>
    %69 = vector.shape_cast %68 : vector<1x8x256xf32> to vector<8x256xf32>
    %c7_48 = arith.constant 7 : index
    %c0_49 = arith.constant 0 : index
    %c0_50 = arith.constant 0 : index
    %70 = vector.load %arg2[%c7_48, %c0_49, %c0_50] : memref<8x8x256xf32, #tpu.memory_space<vmem>>, vector<1x8x256xf32>
    %71 = vector.shape_cast %70 : vector<1x8x256xf32> to vector<8x256xf32>
    %72 = arith.mulf %65, %69 : vector<8x256xf32>
    %73 = arith.addf %59, %72 : vector<8x256xf32>
    %74 = arith.mulf %67, %71 : vector<8x256xf32>
    %75 = arith.subf %73, %74 : vector<8x256xf32>
    %76 = arith.mulf %65, %71 : vector<8x256xf32>
    %77 = arith.addf %63, %76 : vector<8x256xf32>
    %78 = arith.mulf %67, %69 : vector<8x256xf32>
    %79 = arith.addf %77, %78 : vector<8x256xf32>
    %c0_51 = arith.constant 0 : index
    %c0_52 = arith.constant 0 : index
    %80 = vector.load %arg5[%c0_51, %c0_52] : memref<8x512xf32, #tpu.memory_space<vmem>>, vector<8x256xf32>
    tpu.vector_store %arg5[%c0_51, %c0_52], %75 {strides = array<i32>} : memref<8x512xf32, #tpu.memory_space<vmem>>, vector<8x256xf32>,
    %c0_53 = arith.constant 0 : index
    %c256 = arith.constant 256 : index
    %81 = vector.load %arg5[%c0_53, %c256] : memref<8x512xf32, #tpu.memory_space<vmem>>, vector<8x256xf32>
    tpu.vector_store %arg5[%c0_53, %c256], %79 {strides = array<i32>} : memref<8x512xf32, #tpu.memory_space<vmem>>, vector<8x256xf32>,
    return
  }
}

</mosaic_0001>

<llo_original>
// kernel: pr2d_forward_pallas.1
$region0: #{pr2d_forward_pallas.1}
  #allocation0 [shape = 'u32[]', space=smem, size = 0x4, offset = 0x4, fixed_abs, tag = 'smem constant byte address 0x4 - core index']
  #allocation1 [shape = 'u32[144,128]{1,0:T(1,128)}', space=vmem, size = 0x12000, scoped, tag = 'internal scratch']
  %s0 = inlined_call_operand.vmem [shape: bf16[4,1024], index: 0, kind: input, shape index: {}]
  %s1 = inlined_call_operand.vmem [shape: f32[8,8,256], index: 1, kind: input, shape index: {}]
  %s2 = inlined_call_operand.vmem [shape: f32[8,8,256], index: 2, kind: input, shape index: {}]
  %s3 = inlined_call_operand.vmem [shape: bf16[1024,128], index: 3, kind: input, shape index: {}]
  %s4 = inlined_call_operand.vmem [shape: bf16[128,1024], index: 4, kind: input, shape index: {}]
  %s5 = inlined_call_operand.vmem [shape: f32[8,512], index: 5, kind: output, shape index: {0}]
  %s6 = inlined_call_operand.vmem [shape: f32[2,1024], index: 6, kind: output, shape index: {1}]
  %7 = xla_tuple %s5, %s6
  %s8 = sld [smem:[#allocation0]]
  $region38: #{pr2d_forward_pallas.1} parent=0
    _
  %s10 = ssub.s32 1, %s8
  %s11 = scalar_select 0, %s10, %s8
  // Predicated region
  $region2: #{pr2d_forward_pallas.1} parent=0 // pred_check
    _
  $region3: #{pr2d_forward_pallas.1} parent=0 // pred_check_branch
    %13 = sbr.rel (0) target = $region5
  $region4: #{pr2d_forward_pallas.1} parent=0 // pred_region
    _
  $region5: #{pr2d_forward_pallas.1} parent=0 // pred_fallthru
    _
  // Predicated region
  $region6: #{pr2d_forward_pallas.1} parent=0 // pred_check
    _
  $region7: #{pr2d_forward_pallas.1} parent=0 // pred_check_branch
    %15 = sbr.rel (0) target = $region9
  $region8: #{pr2d_forward_pallas.1} parent=0 // pred_region
    _
  $region9: #{pr2d_forward_pallas.1} parent=0 // pred_fallthru
    _
  // Predicated region
  $region10: #{pr2d_forward_pallas.1} parent=0 // pred_check
    _
  $region11: #{pr2d_forward_pallas.1} parent=0 // pred_check_branch
    %17 = sbr.rel (0) target = $region13
  $region12: #{pr2d_forward_pallas.1} parent=0 // pred_region
    _
  $region13: #{pr2d_forward_pallas.1} parent=0 // pred_fallthru
    _
  // Predicated region
  $region14: #{pr2d_forward_pallas.1} parent=0 // pred_check
    _
  $region15: #{pr2d_forward_pallas.1} parent=0 // pred_check_branch
    %19 = sbr.rel (0) target = $region17
  $region16: #{pr2d_forward_pallas.1} parent=0 // pred_region
    _
  $region17: #{pr2d_forward_pallas.1} parent=0 // pred_fallthru
    _
  // Predicated region
  $region18: #{pr2d_forward_pallas.1} parent=0 // pred_check
    _
  $region19: #{pr2d_forward_pallas.1} parent=0 // pred_check_branch
    %21 = sbr.rel (0) target = $region21
  $region20: #{pr2d_forward_pallas.1} parent=0 // pred_region
    _
  $region21: #{pr2d_forward_pallas.1} parent=0 // pred_fallthru
    _
  %v23 = vld [vmem:[%s0] sm:$0xff]
  %v24 = vld [vmem:[%s0 + $0x8] sm:$0xff]
  %v25 = vld [vmem:[%s3] sm:$0xf]
  %v26 = vld [vmem:[%s3 + $0x4] sm:$0xf]
  %v27 = vld [vmem:[%s3 + $0x8] sm:$0xf]
  %v28 = vld [vmem:[%s3 + $0xc] sm:$0xf]
  %v29 = vld [vmem:[%s3 + $0x10] sm:$0xf]
  %v30 = vld [vmem:[%s3 + $0x14] sm:$0xf]
  %v31 = vld [vmem:[%s3 + $0x18] sm:$0xf]
  %v32 = vld [vmem:[%s3 + $0x1c] sm:$0xf]
  %v33 = vld [vmem:[%s3 + $0x20] sm:$0xf]
  %v34 = vld [vmem:[%s3 + $0x24] sm:$0xf]
  %v35 = vld [vmem:[%s3 + $0x28] sm:$0xf]
  %v36 = vld [vmem:[%s3 + $0x2c] sm:$0xf]
  %v37 = vld [vmem:[%s3 + $0x30] sm:$0xf]
  %v38 = vld [vmem:[%s3 + $0x34] sm:$0xf]
  %v39 = vld [vmem:[%s3 + $0x38] sm:$0xf]
  %v40 = vld [vmem:[%s3 + $0x3c] sm:$0xf]
  %v41 = vld [vmem:[%s3 + $0x40] sm:$0xf]
  %v42 = vld [vmem:[%s3 + $0x44] sm:$0xf]
  %v43 = vld [vmem:[%s3 + $0x48] sm:$0xf]
  %v44 = vld [vmem:[%s3 + $0x4c] sm:$0xf]
  %v45 = vld [vmem:[%s3 + $0x50] sm:$0xf]
  %v46 = vld [vmem:[%s3 + $0x54] sm:$0xf]
  %v47 = vld [vmem:[%s3 + $0x58] sm:$0xf]
  %v48 = vld [vmem:[%s3 + $0x5c] sm:$0xf]
  %v49 = vld [vmem:[%s3 + $0x60] sm:$0xf]
  %v50 = vld [vmem:[%s3 + $0x64] sm:$0xf]
  %v51 = vld [vmem:[%s3 + $0x68] sm:$0xf]
  %v52 = vld [vmem:[%s3 + $0x6c] sm:$0xf]
  %v53 = vld [vmem:[%s3 + $0x70] sm:$0xf]
  %v54 = vld [vmem:[%s3 + $0x74] sm:$0xf]
  %v55 = vld [vmem:[%s3 + $0x78] sm:$0xf]
  %v56 = vld [vmem:[%s3 + $0x7c] sm:$0xf]
  %v57 = vld [vmem:[%s3 + $0x80] sm:$0xf]
  %v58 = vld [vmem:[%s3 + $0x84] sm:$0xf]
  %v59 = vld [vmem:[%s3 + $0x88] sm:$0xf]
  %v60 = vld [vmem:[%s3 + $0x8c] sm:$0xf]
  %v61 = vld [vmem:[%s3 + $0x90] sm:$0xf]
  %v62 = vld [vmem:[%s3 + $0x94] sm:$0xf]
  %v63 = vld [vmem:[%s3 + $0x98] sm:$0xf]
  %v64 = vld [vmem:[%s3 + $0x9c] sm:$0xf]
  %v65 = vld [vmem:[%s3 + $0xa0] sm:$0xf]
  %v66 = vld [vmem:[%s3 + $0xa4] sm:$0xf]
  %v67 = vld [vmem:[%s3 + $0xa8] sm:$0xf]
  %v68 = vld [vmem:[%s3 + $0xac] sm:$0xf]
  %v69 = vld [vmem:[%s3 + $0xb0] sm:$0xf]
  %v70 = vld [vmem:[%s3 + $0xb4] sm:$0xf]
  %v71 = vld [vmem:[%s3 + $0xb8] sm:$0xf]
  %v72 = vld [vmem:[%s3 + $0xbc] sm:$0xf]
  %v73 = vld [vmem:[%s3 + $0xc0] sm:$0xf]
  %v74 = vld [vmem:[%s3 + $0xc4] sm:$0xf]
  %v75 = vld [vmem:[%s3 + $0xc8] sm:$0xf]
  %v76 = vld [vmem:[%s3 + $0xcc] sm:$0xf]
  %v77 = vld [vmem:[%s3 + $0xd0] sm:$0xf]
  %v78 = vld [vmem:[%s3 + $0xd4] sm:$0xf]
  %v79 = vld [vmem:[%s3 + $0xd8] sm:$0xf]
  %v80 = vld [vmem:[%s3 + $0xdc] sm:$0xf]
  %v81 = vld [vmem:[%s3 + $0xe0] sm:$0xf]
  %v82 = vld [vmem:[%s3 + $0xe4] sm:$0xf]
  %v83 = vld [vmem:[%s3 + $0xe8] sm:$0xf]
  %v84 = vld [vmem:[%s3 + $0xec] sm:$0xf]
  %v85 = vld [vmem:[%s3 + $0xf0] sm:$0xf]
  %v86 = vld [vmem:[%s3 + $0xf4] sm:$0xf]
  %v87 = vld [vmem:[%s3 + $0xf8] sm:$0xf]
  %v88 = vld [vmem:[%s3 + $0xfc] sm:$0xf]
  %v89 = vld [vmem:[%s3 + $0x100] sm:$0xf]
  %v90 = vld [vmem:[%s3 + $0x104] sm:$0xf]
  %v91 = vld [vmem:[%s3 + $0x108] sm:$0xf]
  %v92 = vld [vmem:[%s3 + $0x10c] sm:$0xf]
  %v93 = vld [vmem:[%s3 + $0x110] sm:$0xf]
  %v94 = vld [vmem:[%s3 + $0x114] sm:$0xf]
  %v95 = vld [vmem:[%s3 + $0x118] sm:$0xf]
  %v96 = vld [vmem:[%s3 + $0x11c] sm:$0xf]
  %v97 = vld [vmem:[%s3 + $0x120] sm:$0xf]
  %v98 = vld [vmem:[%s3 + $0x124] sm:$0xf]
  %v99 = vld [vmem:[%s3 + $0x128] sm:$0xf]
  %v100 = vld [vmem:[%s3 + $0x12c] sm:$0xf]
  %v101 = vld [vmem:[%s3 + $0x130] sm:$0xf]
  %v102 = vld [vmem:[%s3 + $0x134] sm:$0xf]
  %v103 = vld [vmem:[%s3 + $0x138] sm:$0xf]
  %v104 = vld [vmem:[%s3 + $0x13c] sm:$0xf]
  %v105 = vld [vmem:[%s3 + $0x140] sm:$0xf]
  %v106 = vld [vmem:[%s3 + $0x144] sm:$0xf]
  %v107 = vld [vmem:[%s3 + $0x148] sm:$0xf]
  %v108 = vld [vmem:[%s3 + $0x14c] sm:$0xf]
  %v109 = vld [vmem:[%s3 + $0x150] sm:$0xf]
  %v110 = vld [vmem:[%s3 + $0x154] sm:$0xf]
  %v111 = vld [vmem:[%s3 + $0x158] sm:$0xf]
  %v112 = vld [vmem:[%s3 + $0x15c] sm:$0xf]
  %v113 = vld [vmem:[%s3 + $0x160] sm:$0xf]
  %v114 = vld [vmem:[%s3 + $0x164] sm:$0xf]
  %v115 = vld [vmem:[%s3 + $0x168] sm:$0xf]
  %v116 = vld [vmem:[%s3 + $0x16c] sm:$0xf]
  %v117 = vld [vmem:[%s3 + $0x170] sm:$0xf]
  %v118 = vld [vmem:[%s3 + $0x174] sm:$0xf]
  %v119 = vld [vmem:[%s3 + $0x178] sm:$0xf]
  %v120 = vld [vmem:[%s3 + $0x17c] sm:$0xf]
  %v121 = vld [vmem:[%s3 + $0x180] sm:$0xf]
  %v122 = vld [vmem:[%s3 + $0x184] sm:$0xf]
  %v123 = vld [vmem:[%s3 + $0x188] sm:$0xf]
  %v124 = vld [vmem:[%s3 + $0x18c] sm:$0xf]
  %v125 = vld [vmem:[%s3 + $0x190] sm:$0xf]
  %v126 = vld [vmem:[%s3 + $0x194] sm:$0xf]
  %v127 = vld [vmem:[%s3 + $0x198] sm:$0xf]
  %v128 = vld [vmem:[%s3 + $0x19c] sm:$0xf]
  %v129 = vld [vmem:[%s3 + $0x1a0] sm:$0xf]
  %v130 = vld [vmem:[%s3 + $0x1a4] sm:$0xf]
  %v131 = vld [vmem:[%s3 + $0x1a8] sm:$0xf]
  %v132 = vld [vmem:[%s3 + $0x1ac] sm:$0xf]
  %v133 = vld [vmem:[%s3 + $0x1b0] sm:$0xf]
  %v134 = vld [vmem:[%s3 + $0x1b4] sm:$0xf]
  %v135 = vld [vmem:[%s3 + $0x1b8] sm:$0xf]
  %v136 = vld [vmem:[%s3 + $0x1bc] sm:$0xf]
  %v137 = vld [vmem:[%s3 + $0x1c0] sm:$0xf]
  %v138 = vld [vmem:[%s3 + $0x1c4] sm:$0xf]
  %v139 = vld [vmem:[%s3 + $0x1c8] sm:$0xf]
  %v140 = vld [vmem:[%s3 + $0x1cc] sm:$0xf]
  %v141 = vld [vmem:[%s3 + $0x1d0] sm:$0xf]
  %v142 = vld [vmem:[%s3 + $0x1d4] sm:$0xf]
  %v143 = vld [vmem:[%s3 + $0x1d8] sm:$0xf]
  %v144 = vld [vmem:[%s3 + $0x1dc] sm:$0xf]
  %v145 = vld [vmem:[%s3 + $0x1e0] sm:$0xf]
  %v146 = vld [vmem:[%s3 + $0x1e4] sm:$0xf]
  %v147 = vld [vmem:[%s3 + $0x1e8] sm:$0xf]
  %v148 = vld [vmem:[%s3 + $0x1ec] sm:$0xf]
  %v149 = vld [vmem:[%s3 + $0x1f0] sm:$0xf]
  %v150 = vld [vmem:[%s3 + $0x1f4] sm:$0xf]
  %v151 = vld [vmem:[%s3 + $0x1f8] sm:$0xf]
  %v152 = vld [vmem:[%s3 + $0x1fc] sm:$0xf]
  %v155 = vcombine.high %v23, %v23
  %v157 = vunpack.c.l.s4 1983009808
  %v158 = vunpack.c.0.s8 %v157
  %v159 = vlaneseq
  %v160 = vshrl.u32 %v159, 7
  %v161 = vsub.s32 %v158, %v160
  %v162 = vrot.slane %v23, %v161
  %v164 = vunpack.c.l.s4 1983009808
  %v165 = vunpack.c.0.s8 %v164
  %v166 = vlaneseq
  %v167 = vshrl.u32 %v166, 7
  %v168 = vsub.s32 %v165, %v167
  %v169 = vrot.slane %v155, %v168
  %v170 = vcombine.high %v162, %v162
  %v171 = vcombine.high %v169, %v169
  %v172 = vcombine.high %v24, %v24
  %v174 = vunpack.c.l.s4 1983009808
  %v175 = vunpack.c.0.s8 %v174
  %v176 = vlaneseq
  %v177 = vshrl.u32 %v176, 7
  %v178 = vsub.s32 %v175, %v177
  %v179 = vrot.slane %v24, %v178
  %v181 = vunpack.c.l.s4 1983009808
  %v182 = vunpack.c.0.s8 %v181
  %v183 = vlaneseq
  %v184 = vshrl.u32 %v183, 7
  %v185 = vsub.s32 %v182, %v184
  %v186 = vrot.slane %v172, %v185
  %v187 = vcombine.high %v179, %v179
  %v188 = vcombine.high %v186, %v186
  %v325 = vunpack.c.l.b16 %v25
  %v326 = vunpack.c.l.b16 %v26
  %v327 = vunpack.c.l.b16 %v27
  %v328 = vunpack.c.l.b16 %v28
  %v329 = vunpack.c.l.b16 %v29
  %v330 = vunpack.c.l.b16 %v30
  %v331 = vunpack.c.l.b16 %v31
  %v332 = vunpack.c.l.b16 %v32
  %v333 = vunpack.c.l.b16 %v33
  %v334 = vunpack.c.l.b16 %v34
  %v335 = vunpack.c.l.b16 %v35
  %v336 = vunpack.c.l.b16 %v36
  %v337 = vunpack.c.l.b16 %v37
  %v338 = vunpack.c.l.b16 %v38
  %v339 = vunpack.c.l.b16 %v39
  %v340 = vunpack.c.l.b16 %v40
  %v341 = vunpack.c.l.b16 %v41
  %v342 = vunpack.c.l.b16 %v42
  %v343 = vunpack.c.l.b16 %v43
  %v344 = vunpack.c.l.b16 %v44
  %v345 = vunpack.c.l.b16 %v45
  %v346 = vunpack.c.l.b16 %v46
  %v347 = vunpack.c.l.b16 %v47
  %v348 = vunpack.c.l.b16 %v48
  %v349 = vunpack.c.l.b16 %v49
  %v350 = vunpack.c.l.b16 %v50
  %v351 = vunpack.c.l.b16 %v51
  %v352 = vunpack.c.l.b16 %v52
  %v353 = vunpack.c.l.b16 %v53
  %v354 = vunpack.c.l.b16 %v54
  %v355 = vunpack.c.l.b16 %v55
  %v356 = vunpack.c.l.b16 %v56
  %v357 = vunpack.c.l.b16 %v57
  %v358 = vunpack.c.l.b16 %v58
  %v359 = vunpack.c.l.b16 %v59
  %v360 = vunpack.c.l.b16 %v60
  %v361 = vunpack.c.l.b16 %v61
  %v362 = vunpack.c.l.b16 %v62
  %v363 = vunpack.c.l.b16 %v63
  %v364 = vunpack.c.l.b16 %v64
  %v365 = vunpack.c.l.b16 %v65
  %v366 = vunpack.c.l.b16 %v66
  %v367 = vunpack.c.l.b16 %v67
  %v368 = vunpack.c.l.b16 %v68
  %v369 = vunpack.c.l.b16 %v69
  %v370 = vunpack.c.l.b16 %v70
  %v371 = vunpack.c.l.b16 %v71
  %v372 = vunpack.c.l.b16 %v72
  %v373 = vunpack.c.l.b16 %v73
  %v374 = vunpack.c.l.b16 %v74
  %v375 = vunpack.c.l.b16 %v75
  %v376 = vunpack.c.l.b16 %v76
  %v377 = vunpack.c.l.b16 %v77
  %v378 = vunpack.c.l.b16 %v78
  %v379 = vunpack.c.l.b16 %v79
  %v380 = vunpack.c.l.b16 %v80
  %v381 = vunpack.c.l.b16 %v81
  %v382 = vunpack.c.l.b16 %v82
  %v383 = vunpack.c.l.b16 %v83
  %v384 = vunpack.c.l.b16 %v84
  %v385 = vunpack.c.l.b16 %v85
  %v386 = vunpack.c.l.b16 %v86
  %v387 = vunpack.c.l.b16 %v87
  %v388 = vunpack.c.l.b16 %v88
  %v389 = vunpack.c.l.b16 %v89
  %v390 = vunpack.c.l.b16 %v90
  %v391 = vunpack.c.l.b16 %v91
  %v392 = vunpack.c.l.b16 %v92
  %v393 = vunpack.c.l.b16 %v93
  %v394 = vunpack.c.l.b16 %v94
  %v395 = vunpack.c.l.b16 %v95
  %v396 = vunpack.c.l.b16 %v96
  %v397 = vunpack.c.l.b16 %v97
  %v398 = vunpack.c.l.b16 %v98
  %v399 = vunpack.c.l.b16 %v99
  %v400 = vunpack.c.l.b16 %v100
  %v401 = vunpack.c.l.b16 %v101
  %v402 = vunpack.c.l.b16 %v102
  %v403 = vunpack.c.l.b16 %v103
  %v404 = vunpack.c.l.b16 %v104
  %v405 = vunpack.c.l.b16 %v105
  %v406 = vunpack.c.l.b16 %v106
  %v407 = vunpack.c.l.b16 %v107
  %v408 = vunpack.c.l.b16 %v108
  %v409 = vunpack.c.l.b16 %v109
  %v410 = vunpack.c.l.b16 %v110
  %v411 = vunpack.c.l.b16 %v111
  %v412 = vunpack.c.l.b16 %v112
  %v413 = vunpack.c.l.b16 %v113
  %v414 = vunpack.c.l.b16 %v114
  %v415 = vunpack.c.l.b16 %v115
  %v416 = vunpack.c.l.b16 %v116
  %v417 = vunpack.c.l.b16 %v117
  %v418 = vunpack.c.l.b16 %v118
  %v419 = vunpack.c.l.b16 %v119
  %v420 = vunpack.c.l.b16 %v120
  %v421 = vunpack.c.l.b16 %v121
  %v422 = vunpack.c.l.b16 %v122
  %v423 = vunpack.c.l.b16 %v123
  %v424 = vunpack.c.l.b16 %v124
  %v425 = vunpack.c.l.b16 %v125
  %v426 = vunpack.c.l.b16 %v126
  %v427 = vunpack.c.l.b16 %v127
  %v428 = vunpack.c.l.b16 %v128
  %v429 = vunpack.c.l.b16 %v129
  %v430 = vunpack.c.l.b16 %v130
  %v431 = vunpack.c.l.b16 %v131
  %v432 = vunpack.c.l.b16 %v132
  %v433 = vunpack.c.l.b16 %v133
  %v434 = vunpack.c.l.b16 %v134
  %v435 = vunpack.c.l.b16 %v135
  %v436 = vunpack.c.l.b16 %v136
  %v437 = vunpack.c.l.b16 %v137
  %v438 = vunpack.c.l.b16 %v138
  %v439 = vunpack.c.l.b16 %v139
  %v440 = vunpack.c.l.b16 %v140
  %v441 = vunpack.c.l.b16 %v141
  %v442 = vunpack.c.l.b16 %v142
  %v443 = vunpack.c.l.b16 %v143
  %v444 = vunpack.c.l.b16 %v144
  %v445 = vunpack.c.l.b16 %v145
  %v446 = vunpack.c.l.b16 %v146
  %v447 = vunpack.c.l.b16 %v147
  %v448 = vunpack.c.l.b16 %v148
  %v449 = vunpack.c.l.b16 %v149
  %v450 = vunpack.c.l.b16 %v150
  %v451 = vunpack.c.l.b16 %v151
  %v452 = vunpack.c.l.b16 %v152
  %v453 = vpack.c.b16 %v326, %v325
  %v454 = vpack.c.b16 %v328, %v327
  %v455 = vpack.c.b16 %v330, %v329
  %v456 = vpack.c.b16 %v332, %v331
  %v457 = vpack.c.b16 %v334, %v333
  %v458 = vpack.c.b16 %v336, %v335
  %v459 = vpack.c.b16 %v338, %v337
  %v460 = vpack.c.b16 %v340, %v339
  %v461 = vpack.c.b16 %v342, %v341
  %v462 = vpack.c.b16 %v344, %v343
  %v463 = vpack.c.b16 %v346, %v345
  %v464 = vpack.c.b16 %v348, %v347
  %v465 = vpack.c.b16 %v350, %v349
  %v466 = vpack.c.b16 %v352, %v351
  %v467 = vpack.c.b16 %v354, %v353
  %v468 = vpack.c.b16 %v356, %v355
  %v469 = vpack.c.b16 %v358, %v357
  %v470 = vpack.c.b16 %v360, %v359
  %v471 = vpack.c.b16 %v362, %v361
  %v472 = vpack.c.b16 %v364, %v363
  %v473 = vpack.c.b16 %v366, %v365
  %v474 = vpack.c.b16 %v368, %v367
  %v475 = vpack.c.b16 %v370, %v369
  %v476 = vpack.c.b16 %v372, %v371
  %v477 = vpack.c.b16 %v374, %v373
  %v478 = vpack.c.b16 %v376, %v375
  %v479 = vpack.c.b16 %v378, %v377
  %v480 = vpack.c.b16 %v380, %v379
  %v481 = vpack.c.b16 %v382, %v381
  %v482 = vpack.c.b16 %v384, %v383
  %v483 = vpack.c.b16 %v386, %v385
  %v484 = vpack.c.b16 %v388, %v387
  %v485 = vpack.c.b16 %v390, %v389
  %v486 = vpack.c.b16 %v392, %v391
  %v487 = vpack.c.b16 %v394, %v393
  %v488 = vpack.c.b16 %v396, %v395
  %v489 = vpack.c.b16 %v398, %v397
  %v490 = vpack.c.b16 %v400, %v399
  %v491 = vpack.c.b16 %v402, %v401
  %v492 = vpack.c.b16 %v404, %v403
  %v493 = vpack.c.b16 %v406, %v405
  %v494 = vpack.c.b16 %v408, %v407
  %v495 = vpack.c.b16 %v410, %v409
  %v496 = vpack.c.b16 %v412, %v411
  %v497 = vpack.c.b16 %v414, %v413
  %v498 = vpack.c.b16 %v416, %v415
  %v499 = vpack.c.b16 %v418, %v417
  %v500 = vpack.c.b16 %v420, %v419
  %v501 = vpack.c.b16 %v422, %v421
  %v502 = vpack.c.b16 %v424, %v423
  %v503 = vpack.c.b16 %v426, %v425
  %v504 = vpack.c.b16 %v428, %v427
  %v505 = vpack.c.b16 %v430, %v429
  %v506 = vpack.c.b16 %v432, %v431
  %v507 = vpack.c.b16 %v434, %v433
  %v508 = vpack.c.b16 %v436, %v435
  %v509 = vpack.c.b16 %v438, %v437
  %v510 = vpack.c.b16 %v440, %v439
  %v511 = vpack.c.b16 %v442, %v441
  %v512 = vpack.c.b16 %v444, %v443
  %v513 = vpack.c.b16 %v446, %v445
  %v514 = vpack.c.b16 %v448, %v447
  %v515 = vpack.c.b16 %v450, %v449
  %v516 = vpack.c.b16 %v452, %v451
  %581 = vmatprep.subr.bf16.mxu0 0
  %582 = vmatpush1.bf16.msra.mxu0 %v453
  %583 = vmatprep.subr.bf16.mxu0 0
  %584 = vmatpush1.bf16.msra.mxu0 %v454
  %585 = vmatprep.subr.bf16.mxu0 0
  %586 = vmatpush1.bf16.msra.mxu0 %v455
  %587 = vmatprep.subr.bf16.mxu0 0
  %588 = vmatpush1.bf16.msra.mxu0 %v456
  %589 = vmatprep.subr.bf16.mxu0 0
  %590 = vmatpush1.bf16.msra.mxu0 %v457
  %591 = vmatprep.subr.bf16.mxu0 0
  %592 = vmatpush1.bf16.msra.mxu0 %v458
  %593 = vmatprep.subr.bf16.mxu0 0
  %594 = vmatpush1.bf16.msra.mxu0 %v459
  %595 = vmatprep.subr.bf16.mxu0 0
  %596 = vmatpush1.bf16.msra.mxu0 %v460
  %597 = vmatprep.subr.bf16.mxu0 0
  %598 = vmatpush1.bf16.msra.mxu0 %v461
  %599 = vmatprep.subr.bf16.mxu0 0
  %600 = vmatpush1.bf16.msra.mxu0 %v462
  %601 = vmatprep.subr.bf16.mxu0 0
  %602 = vmatpush1.bf16.msra.mxu0 %v463
  %603 = vmatprep.subr.bf16.mxu0 0
  %604 = vmatpush1.bf16.msra.mxu0 %v464
  %605 = vmatprep.subr.bf16.mxu0 0
  %606 = vmatpush1.bf16.msra.mxu0 %v465
  %607 = vmatprep.subr.bf16.mxu0 0
  %608 = vmatpush1.bf16.msra.mxu0 %v466
  %609 = vmatprep.subr.bf16.mxu0 0
  %610 = vmatpush1.bf16.msra.mxu0 %v467
  %611 = vmatprep.subr.bf16.mxu0 0
  %612 = vmatpush1.bf16.msra.mxu0 %v468
  %613 = vmatprep.mubr.bf16.mxu0 %v170
  %614 = vmatmul.mubr.bf16.gmra.mrb[0].mxu0 %v162
  %v615 = vpop.f32.mrb[0].mxu0
  %v616 = vadd.f32 0.0, %v615
  %v617 = vpop.f32.mrb[0].mxu0
  %v618 = vpop.f32.mrb[0].mxu0
  %v619 = vpop.f32.mrb[0].mxu0
  %620 = vdwg.mxu0
  %621 = vmatprep.subr.bf16.mxu0 0
  %622 = vmatpush1.bf16.msra.mxu0 %v469
  %623 = vmatprep.subr.bf16.mxu0 0
  %624 = vmatpush1.bf16.msra.mxu0 %v470
  %625 = vmatprep.subr.bf16.mxu0 0
  %626 = vmatpush1.bf16.msra.mxu0 %v471
  %627 = vmatprep.subr.bf16.mxu0 0
  %628 = vmatpush1.bf16.msra.mxu0 %v472
  %629 = vmatprep.subr.bf16.mxu0 0
  %630 = vmatpush1.bf16.msra.mxu0 %v473
  %631 = vmatprep.subr.bf16.mxu0 0
  %632 = vmatpush1.bf16.msra.mxu0 %v474
  %633 = vmatprep.subr.bf16.mxu0 0
  %634 = vmatpush1.bf16.msra.mxu0 %v475
  %635 = vmatprep.subr.bf16.mxu0 0
  %636 = vmatpush1.bf16.msra.mxu0 %v476
  %637 = vmatprep.subr.bf16.mxu0 0
  %638 = vmatpush1.bf16.msra.mxu0 %v477
  %639 = vmatprep.subr.bf16.mxu0 0
  %640 = vmatpush1.bf16.msra.mxu0 %v478
  %641 = vmatprep.subr.bf16.mxu0 0
  %642 = vmatpush1.bf16.msra.mxu0 %v479
  %643 = vmatprep.subr.bf16.mxu0 0
  %644 = vmatpush1.bf16.msra.mxu0 %v480
  %645 = vmatprep.subr.bf16.mxu0 0
  %646 = vmatpush1.bf16.msra.mxu0 %v481
  %647 = vmatprep.subr.bf16.mxu0 0
  %648 = vmatpush1.bf16.msra.mxu0 %v482
  %649 = vmatprep.subr.bf16.mxu0 0
  %650 = vmatpush1.bf16.msra.mxu0 %v483
  %651 = vmatprep.subr.bf16.mxu0 0
  %652 = vmatpush1.bf16.msra.mxu0 %v484
  %653 = vmatprep.mubr.bf16.mxu0 %v171
  %654 = vmatmul.mubr.bf16.gmra.mrb[0].mxu0 %v169
  %v655 = vpop.f32.mrb[0].mxu0
  %v656 = vadd.f32 %v616, %v655
  %v657 = vpop.f32.mrb[0].mxu0
  %v658 = vpop.f32.mrb[0].mxu0
  %v659 = vpop.f32.mrb[0].mxu0
  %660 = vdwg.mxu0
  %661 = vmatprep.subr.bf16.mxu0 0
  %662 = vmatpush1.bf16.msra.mxu0 %v485
  %663 = vmatprep.subr.bf16.mxu0 0
  %664 = vmatpush1.bf16.msra.mxu0 %v486
  %665 = vmatprep.subr.bf16.mxu0 0
  %666 = vmatpush1.bf16.msra.mxu0 %v487
  %667 = vmatprep.subr.bf16.mxu0 0
  %668 = vmatpush1.bf16.msra.mxu0 %v488
  %669 = vmatprep.subr.bf16.mxu0 0
  %670 = vmatpush1.bf16.msra.mxu0 %v489
  %671 = vmatprep.subr.bf16.mxu0 0
  %672 = vmatpush1.bf16.msra.mxu0 %v490
  %673 = vmatprep.subr.bf16.mxu0 0
  %674 = vmatpush1.bf16.msra.mxu0 %v491
  %675 = vmatprep.subr.bf16.mxu0 0
  %676 = vmatpush1.bf16.msra.mxu0 %v492
  %677 = vmatprep.subr.bf16.mxu0 0
  %678 = vmatpush1.bf16.msra.mxu0 %v493
  %679 = vmatprep.subr.bf16.mxu0 0
  %680 = vmatpush1.bf16.msra.mxu0 %v494
  %681 = vmatprep.subr.bf16.mxu0 0
  %682 = vmatpush1.bf16.msra.mxu0 %v495
  %683 = vmatprep.subr.bf16.mxu0 0
  %684 = vmatpush1.bf16.msra.mxu0 %v496
  %685 = vmatprep.subr.bf16.mxu0 0
  %686 = vmatpush1.bf16.msra.mxu0 %v497
  %687 = vmatprep.subr.bf16.mxu0 0
  %688 = vmatpush1.bf16.msra.mxu0 %v498
  %689 = vmatprep.subr.bf16.mxu0 0
  %690 = vmatpush1.bf16.msra.mxu0 %v499
  %691 = vmatprep.subr.bf16.mxu0 0
  %692 = vmatpush1.bf16.msra.mxu0 %v500
  %693 = vmatprep.mubr.bf16.mxu0 %v187
  %694 = vmatmul.mubr.bf16.gmra.mrb[0].mxu0 %v179
  %v695 = vpop.f32.mrb[0].mxu0
  %v696 = vadd.f32 %v656, %v695
  %v697 = vpop.f32.mrb[0].mxu0
  %v698 = vpop.f32.mrb[0].mxu0
  %v699 = vpop.f32.mrb[0].mxu0
  %700 = vdwg.mxu0
  %701 = vmatprep.subr.bf16.mxu0 0
  %702 = vmatpush1.bf16.msra.mxu0 %v501
  %703 = vmatprep.subr.bf16.mxu0 0
  %704 = vmatpush1.bf16.msra.mxu0 %v502
  %705 = vmatprep.subr.bf16.mxu0 0
  %706 = vmatpush1.bf16.msra.mxu0 %v503
  %707 = vmatprep.subr.bf16.mxu0 0
  %708 = vmatpush1.bf16.msra.mxu0 %v504
  %709 = vmatprep.subr.bf16.mxu0 0
  %710 = vmatpush1.bf16.msra.mxu0 %v505
  %711 = vmatprep.subr.bf16.mxu0 0
  %712 = vmatpush1.bf16.msra.mxu0 %v506
  %713 = vmatprep.subr.bf16.mxu0 0
  %714 = vmatpush1.bf16.msra.mxu0 %v507
  %715 = vmatprep.subr.bf16.mxu0 0
  %716 = vmatpush1.bf16.msra.mxu0 %v508
  %717 = vmatprep.subr.bf16.mxu0 0
  %718 = vmatpush1.bf16.msra.mxu0 %v509
  %719 = vmatprep.subr.bf16.mxu0 0
  %720 = vmatpush1.bf16.msra.mxu0 %v510
  %721 = vmatprep.subr.bf16.mxu0 0
  %722 = vmatpush1.bf16.msra.mxu0 %v511
  %723 = vmatprep.subr.bf16.mxu0 0
  %724 = vmatpush1.bf16.msra.mxu0 %v512
  %725 = vmatprep.subr.bf16.mxu0 0
  %726 = vmatpush1.bf16.msra.mxu0 %v513
  %727 = vmatprep.subr.bf16.mxu0 0
  %728 = vmatpush1.bf16.msra.mxu0 %v514
  %729 = vmatprep.subr.bf16.mxu0 0
  %730 = vmatpush1.bf16.msra.mxu0 %v515
  %731 = vmatprep.subr.bf16.mxu0 0
  %732 = vmatpush1.bf16.msra.mxu0 %v516
  %733 = vmatprep.mubr.bf16.mxu0 %v188
  %734 = vmatmul.mubr.bf16.gmra.mrb[0].mxu0 %v186
  %v735 = vpop.f32.mrb[0].mxu0
  %v736 = vadd.f32 %v696, %v735
  %v737 = vpop.f32.mrb[0].mxu0
  %v738 = vpop.f32.mrb[0].mxu0
  %v739 = vpop.f32.mrb[0].mxu0
  %740 = vdwg.mxu0
  %v742 = vrot.slane %v736, 2
  %743 = vrot.lane.b32.xlu0 %v742, 64
  %v744 = vpop.permute.xlu0 %743
  %v746 = vsub.f32 %v736, %v744
  %v747 = vadd.f32 %v736, %v744
  %vm748 = vcmask 523264
  %v749 = vsel %vm748, %v746, %v747
  %v750 = vpack.c.bf16 %v749, %v749
  %v751 = vld [vmem:[%s4] sm:$0xff]
  %v752 = vld [vmem:[%s4 + $0x8] sm:$0xff]
  %v753 = vld [vmem:[%s4 + $0x10] sm:$0xff]
  %v754 = vld [vmem:[%s4 + $0x18] sm:$0xff]
  %v755 = vld [vmem:[%s4 + $0x20] sm:$0xff]
  %v756 = vld [vmem:[%s4 + $0x28] sm:$0xff]
  %v757 = vld [vmem:[%s4 + $0x30] sm:$0xff]
  %v758 = vld [vmem:[%s4 + $0x38] sm:$0xff]
  %v759 = vld [vmem:[%s4 + $0x40] sm:$0xff]
  %v760 = vld [vmem:[%s4 + $0x48] sm:$0xff]
  %v761 = vld [vmem:[%s4 + $0x50] sm:$0xff]
  %v762 = vld [vmem:[%s4 + $0x58] sm:$0xff]
  %v763 = vld [vmem:[%s4 + $0x60] sm:$0xff]
  %v764 = vld [vmem:[%s4 + $0x68] sm:$0xff]
  %v765 = vld [vmem:[%s4 + $0x70] sm:$0xff]
  %v766 = vld [vmem:[%s4 + $0x78] sm:$0xff]
  %v767 = vld [vmem:[%s4 + $0x80] sm:$0xff]
  %v768 = vld [vmem:[%s4 + $0x88] sm:$0xff]
  %v769 = vld [vmem:[%s4 + $0x90] sm:$0xff]
  %v770 = vld [vmem:[%s4 + $0x98] sm:$0xff]
  %v771 = vld [vmem:[%s4 + $0xa0] sm:$0xff]
  %v772 = vld [vmem:[%s4 + $0xa8] sm:$0xff]
  %v773 = vld [vmem:[%s4 + $0xb0] sm:$0xff]
  %v774 = vld [vmem:[%s4 + $0xb8] sm:$0xff]
  %v775 = vld [vmem:[%s4 + $0xc0] sm:$0xff]
  %v776 = vld [vmem:[%s4 + $0xc8] sm:$0xff]
  %v777 = vld [vmem:[%s4 + $0xd0] sm:$0xff]
  %v778 = vld [vmem:[%s4 + $0xd8] sm:$0xff]
  %v779 = vld [vmem:[%s4 + $0xe0] sm:$0xff]
  %v780 = vld [vmem:[%s4 + $0xe8] sm:$0xff]
  %v781 = vld [vmem:[%s4 + $0xf0] sm:$0xff]
  %v782 = vld [vmem:[%s4 + $0xf8] sm:$0xff]
  %v783 = vld [vmem:[%s4 + $0x100] sm:$0xff]
  %v784 = vld [vmem:[%s4 + $0x108] sm:$0xff]
  %v785 = vld [vmem:[%s4 + $0x110] sm:$0xff]
  %v786 = vld [vmem:[%s4 + $0x118] sm:$0xff]
  %v787 = vld [vmem:[%s4 + $0x120] sm:$0xff]
  %v788 = vld [vmem:[%s4 + $0x128] sm:$0xff]
  %v789 = vld [vmem:[%s4 + $0x130] sm:$0xff]
  %v790 = vld [vmem:[%s4 + $0x138] sm:$0xff]
  %v791 = vld [vmem:[%s4 + $0x140] sm:$0xff]
  %v792 = vld [vmem:[%s4 + $0x148] sm:$0xff]
  %v793 = vld [vmem:[%s4 + $0x150] sm:$0xff]
  %v794 = vld [vmem:[%s4 + $0x158] sm:$0xff]
  %v795 = vld [vmem:[%s4 + $0x160] sm:$0xff]
  %v796 = vld [vmem:[%s4 + $0x168] sm:$0xff]
  %v797 = vld [vmem:[%s4 + $0x170] sm:$0xff]
  %v798 = vld [vmem:[%s4 + $0x178] sm:$0xff]
  %v799 = vld [vmem:[%s4 + $0x180] sm:$0xff]
  %v800 = vld [vmem:[%s4 + $0x188] sm:$0xff]
  %v801 = vld [vmem:[%s4 + $0x190] sm:$0xff]
  %v802 = vld [vmem:[%s4 + $0x198] sm:$0xff]
  %v803 = vld [vmem:[%s4 + $0x1a0] sm:$0xff]
  %v804 = vld [vmem:[%s4 + $0x1a8] sm:$0xff]
  %v805 = vld [vmem:[%s4 + $0x1b0] sm:$0xff]
  %v806 = vld [vmem:[%s4 + $0x1b8] sm:$0xff]
  %v807 = vld [vmem:[%s4 + $0x1c0] sm:$0xff]
  %v808 = vld [vmem:[%s4 + $0x1c8] sm:$0xff]
  %v809 = vld [vmem:[%s4 + $0x1d0] sm:$0xff]
  %v810 = vld [vmem:[%s4 + $0x1d8] sm:$0xff]
  %v811 = vld [vmem:[%s4 + $0x1e0] sm:$0xff]
  %v812 = vld [vmem:[%s4 + $0x1e8] sm:$0xff]
  %v813 = vld [vmem:[%s4 + $0x1f0] sm:$0xff]
  %v814 = vld [vmem:[%s4 + $0x1f8] sm:$0xff]
  %v879 = vunpack.c.l.b16 %v751
  %v880 = vunpack.c.h.b16 %v751
  %v881 = vunpack.c.l.b16 %v752
  %v882 = vunpack.c.h.b16 %v752
  %v883 = vunpack.c.l.b16 %v753
  %v884 = vunpack.c.h.b16 %v753
  %v885 = vunpack.c.l.b16 %v754
  %v886 = vunpack.c.h.b16 %v754
  %v887 = vunpack.c.l.b16 %v755
  %v888 = vunpack.c.h.b16 %v755
  %v889 = vunpack.c.l.b16 %v756
  %v890 = vunpack.c.h.b16 %v756
  %v891 = vunpack.c.l.b16 %v757
  %v892 = vunpack.c.h.b16 %v757
  %v893 = vunpack.c.l.b16 %v758
  %v894 = vunpack.c.h.b16 %v758
  %v895 = vunpack.c.l.b16 %v759
  %v896 = vunpack.c.h.b16 %v759
  %v897 = vunpack.c.l.b16 %v760
  %v898 = vunpack.c.h.b16 %v760
  %v899 = vunpack.c.l.b16 %v761
  %v900 = vunpack.c.h.b16 %v761
  %v901 = vunpack.c.l.b16 %v762
  %v902 = vunpack.c.h.b16 %v762
  %v903 = vunpack.c.l.b16 %v763
  %v904 = vunpack.c.h.b16 %v763
  %v905 = vunpack.c.l.b16 %v764
  %v906 = vunpack.c.h.b16 %v764
  %v907 = vunpack.c.l.b16 %v765
  %v908 = vunpack.c.h.b16 %v765
  %v909 = vunpack.c.l.b16 %v766
  %v910 = vunpack.c.h.b16 %v766
  %v911 = vunpack.c.l.b16 %v767
  %v912 = vunpack.c.h.b16 %v767
  %v913 = vunpack.c.l.b16 %v768
  %v914 = vunpack.c.h.b16 %v768
  %v915 = vunpack.c.l.b16 %v769
  %v916 = vunpack.c.h.b16 %v769
  %v917 = vunpack.c.l.b16 %v770
  %v918 = vunpack.c.h.b16 %v770
  %v919 = vunpack.c.l.b16 %v771
  %v920 = vunpack.c.h.b16 %v771
  %v921 = vunpack.c.l.b16 %v772
  %v922 = vunpack.c.h.b16 %v772
  %v923 = vunpack.c.l.b16 %v773
  %v924 = vunpack.c.h.b16 %v773
  %v925 = vunpack.c.l.b16 %v774
  %v926 = vunpack.c.h.b16 %v774
  %v927 = vunpack.c.l.b16 %v775
  %v928 = vunpack.c.h.b16 %v775
  %v929 = vunpack.c.l.b16 %v776
  %v930 = vunpack.c.h.b16 %v776
  %v931 = vunpack.c.l.b16 %v777
  %v932 = vunpack.c.h.b16 %v777
  %v933 = vunpack.c.l.b16 %v778
  %v934 = vunpack.c.h.b16 %v778
  %v935 = vunpack.c.l.b16 %v779
  %v936 = vunpack.c.h.b16 %v779
  %v937 = vunpack.c.l.b16 %v780
  %v938 = vunpack.c.h.b16 %v780
  %v939 = vunpack.c.l.b16 %v781
  %v940 = vunpack.c.h.b16 %v781
  %v941 = vunpack.c.l.b16 %v782
  %v942 = vunpack.c.h.b16 %v782
  %v943 = vunpack.c.l.b16 %v783
  %v944 = vunpack.c.h.b16 %v783
  %v945 = vunpack.c.l.b16 %v784
  %v946 = vunpack.c.h.b16 %v784
  %v947 = vunpack.c.l.b16 %v785
  %v948 = vunpack.c.h.b16 %v785
  %v949 = vunpack.c.l.b16 %v786
  %v950 = vunpack.c.h.b16 %v786
  %v951 = vunpack.c.l.b16 %v787
  %v952 = vunpack.c.h.b16 %v787
  %v953 = vunpack.c.l.b16 %v788
  %v954 = vunpack.c.h.b16 %v788
  %v955 = vunpack.c.l.b16 %v789
  %v956 = vunpack.c.h.b16 %v789
  %v957 = vunpack.c.l.b16 %v790
  %v958 = vunpack.c.h.b16 %v790
  %v959 = vunpack.c.l.b16 %v791
  %v960 = vunpack.c.h.b16 %v791
  %v961 = vunpack.c.l.b16 %v792
  %v962 = vunpack.c.h.b16 %v792
  %v963 = vunpack.c.l.b16 %v793
  %v964 = vunpack.c.h.b16 %v793
  %v965 = vunpack.c.l.b16 %v794
  %v966 = vunpack.c.h.b16 %v794
  %v967 = vunpack.c.l.b16 %v795
  %v968 = vunpack.c.h.b16 %v795
  %v969 = vunpack.c.l.b16 %v796
  %v970 = vunpack.c.h.b16 %v796
  %v971 = vunpack.c.l.b16 %v797
  %v972 = vunpack.c.h.b16 %v797
  %v973 = vunpack.c.l.b16 %v798
  %v974 = vunpack.c.h.b16 %v798
  %v975 = vunpack.c.l.b16 %v799
  %v976 = vunpack.c.h.b16 %v799
  %v977 = vunpack.c.l.b16 %v800
  %v978 = vunpack.c.h.b16 %v800
  %v979 = vunpack.c.l.b16 %v801
  %v980 = vunpack.c.h.b16 %v801
  %v981 = vunpack.c.l.b16 %v802
  %v982 = vunpack.c.h.b16 %v802
  %v983 = vunpack.c.l.b16 %v803
  %v984 = vunpack.c.h.b16 %v803
  %v985 = vunpack.c.l.b16 %v804
  %v986 = vunpack.c.h.b16 %v804
  %v987 = vunpack.c.l.b16 %v805
  %v988 = vunpack.c.h.b16 %v805
  %v989 = vunpack.c.l.b16 %v806
  %v990 = vunpack.c.h.b16 %v806
  %v991 = vunpack.c.l.b16 %v807
  %v992 = vunpack.c.h.b16 %v807
  %v993 = vunpack.c.l.b16 %v808
  %v994 = vunpack.c.h.b16 %v808
  %v995 = vunpack.c.l.b16 %v809
  %v996 = vunpack.c.h.b16 %v809
  %v997 = vunpack.c.l.b16 %v810
  %v998 = vunpack.c.h.b16 %v810
  %v999 = vunpack.c.l.b16 %v811
  %v1000 = vunpack.c.h.b16 %v811
  %v1001 = vunpack.c.l.b16 %v812
  %v1002 = vunpack.c.h.b16 %v812
  %v1003 = vunpack.c.l.b16 %v813
  %v1004 = vunpack.c.h.b16 %v813
  %v1005 = vunpack.c.l.b16 %v814
  %v1006 = vunpack.c.h.b16 %v814
  %v1007 = vpack.c.b16 %v887, %v879
  %v1008 = vpack.c.b16 %v888, %v880
  %v1009 = vpack.c.b16 %v889, %v881
  %v1010 = vpack.c.b16 %v890, %v882
  %v1011 = vpack.c.b16 %v891, %v883
  %v1012 = vpack.c.b16 %v892, %v884
  %v1013 = vpack.c.b16 %v893, %v885
  %v1014 = vpack.c.b16 %v894, %v886
  %v1015 = vpack.c.b16 %v903, %v895
  %v1016 = vpack.c.b16 %v904, %v896
  %v1017 = vpack.c.b16 %v905, %v897
  %v1018 = vpack.c.b16 %v906, %v898
  %v1019 = vpack.c.b16 %v907, %v899
  %v1020 = vpack.c.b16 %v908, %v900
  %v1021 = vpack.c.b16 %v909, %v901
  %v1022 = vpack.c.b16 %v910, %v902
  %v1023 = vpack.c.b16 %v919, %v911
  %v1024 = vpack.c.b16 %v920, %v912
  %v1025 = vpack.c.b16 %v921, %v913
  %v1026 = vpack.c.b16 %v922, %v914
  %v1027 = vpack.c.b16 %v923, %v915
  %v1028 = vpack.c.b16 %v924, %v916
  %v1029 = vpack.c.b16 %v925, %v917
  %v1030 = vpack.c.b16 %v926, %v918
  %v1031 = vpack.c.b16 %v935, %v927
  %v1032 = vpack.c.b16 %v936, %v928
  %v1033 = vpack.c.b16 %v937, %v929
  %v1034 = vpack.c.b16 %v938, %v930
  %v1035 = vpack.c.b16 %v939, %v931
  %v1036 = vpack.c.b16 %v940, %v932
  %v1037 = vpack.c.b16 %v941, %v933
  %v1038 = vpack.c.b16 %v942, %v934
  %v1039 = vpack.c.b16 %v951, %v943
  %v1040 = vpack.c.b16 %v952, %v944
  %v1041 = vpack.c.b16 %v953, %v945
  %v1042 = vpack.c.b16 %v954, %v946
  %v1043 = vpack.c.b16 %v955, %v947
  %v1044 = vpack.c.b16 %v956, %v948
  %v1045 = vpack.c.b16 %v957, %v949
  %v1046 = vpack.c.b16 %v958, %v950
  %v1047 = vpack.c.b16 %v967, %v959
  %v1048 = vpack.c.b16 %v968, %v960
  %v1049 = vpack.c.b16 %v969, %v961
  %v1050 = vpack.c.b16 %v970, %v962
  %v1051 = vpack.c.b16 %v971, %v963
  %v1052 = vpack.c.b16 %v972, %v964
  %v1053 = vpack.c.b16 %v973, %v965
  %v1054 = vpack.c.b16 %v974, %v966
  %v1055 = vpack.c.b16 %v983, %v975
  %v1056 = vpack.c.b16 %v984, %v976
  %v1057 = vpack.c.b16 %v985, %v977
  %v1058 = vpack.c.b16 %v986, %v978
  %v1059 = vpack.c.b16 %v987, %v979
  %v1060 = vpack.c.b16 %v988, %v980
  %v1061 = vpack.c.b16 %v989, %v981
  %v1062 = vpack.c.b16 %v990, %v982
  %v1063 = vpack.c.b16 %v999, %v991
  %v1064 = vpack.c.b16 %v1000, %v992
  %v1065 = vpack.c.b16 %v1001, %v993
  %v1066 = vpack.c.b16 %v1002, %v994
  %v1067 = vpack.c.b16 %v1003, %v995
  %v1068 = vpack.c.b16 %v1004, %v996
  %v1069 = vpack.c.b16 %v1005, %v997
  %v1070 = vpack.c.b16 %v1006, %v998
  %1135 = vmatprep.subr.bf16.mxu0 %v1008
  %1136 = vmatpush1.bf16.msra.mxu0 %v1007
  %1137 = vmatprep.subr.bf16.mxu0 %v1016
  %1138 = vmatpush1.bf16.msra.mxu0 %v1015
  %1139 = vmatprep.subr.bf16.mxu0 %v1024
  %1140 = vmatpush1.bf16.msra.mxu0 %v1023
  %1141 = vmatprep.subr.bf16.mxu0 %v1032
  %1142 = vmatpush1.bf16.msra.mxu0 %v1031
  %1143 = vmatprep.subr.bf16.mxu0 %v1040
  %1144 = vmatpush1.bf16.msra.mxu0 %v1039
  %1145 = vmatprep.subr.bf16.mxu0 %v1048
  %1146 = vmatpush1.bf16.msra.mxu0 %v1047
  %1147 = vmatprep.subr.bf16.mxu0 %v1056
  %1148 = vmatpush1.bf16.msra.mxu0 %v1055
  %1149 = vmatprep.subr.bf16.mxu0 %v1064
  %1150 = vmatpush1.bf16.msra.mxu0 %v1063
  %1151 = vmatprep.subr.bf16.mxu0 0
  %1152 = vmatpush1.bf16.msra.mxu0 0
  %1153 = vmatprep.subr.bf16.mxu0 0
  %1154 = vmatpush1.bf16.msra.mxu0 0
  %1155 = vmatprep.subr.bf16.mxu0 0
  %1156 = vmatpush1.bf16.msra.mxu0 0
  %1157 = vmatprep.subr.bf16.mxu0 0
  %1158 = vmatpush1.bf16.msra.mxu0 0
  %1159 = vmatprep.subr.bf16.mxu0 0
  %1160 = vmatpush1.bf16.msra.mxu0 0
  %1161 = vmatprep.subr.bf16.mxu0 0
  %1162 = vmatpush1.bf16.msra.mxu0 0
  %1163 = vmatprep.subr.bf16.mxu0 0
  %1164 = vmatpush1.bf16.msra.mxu0 0
  %1165 = vmatprep.subr.bf16.mxu0 0
  %1166 = vmatpush1.bf16.msra.mxu0 0
  %1167 = vmatprep.mubr.bf16.mxu0 0
  %1168 = vmatmul.mubr.bf16.gmra.mrb[0].mxu0 %v750
  %v1169 = vpop.f32.mrb[0].mxu0
  %v1170 = vadd.f32 0.0, %v1169
  %v1171 = vpop.f32.mrb[0].mxu0
  %v1172 = vadd.f32 0.0, %v1171
  %v1173 = vpop.f32.mrb[0].mxu0
  %v1174 = vpop.f32.mrb[0].mxu0
  %1175 = vdwg.mxu0
  %1176 = vmatprep.subr.bf16.mxu0 %v1010
  %1177 = vmatpush1.bf16.msra.mxu0 %v1009
  %1178 = vmatprep.subr.bf16.mxu0 %v1018
  %1179 = vmatpush1.bf16.msra.mxu0 %v1017
  %1180 = vmatprep.subr.bf16.mxu0 %v1026
  %1181 = vmatpush1.bf16.msra.mxu0 %v1025
  %1182 = vmatprep.subr.bf16.mxu0 %v1034
  %1183 = vmatpush1.bf16.msra.mxu0 %v1033
  %1184 = vmatprep.subr.bf16.mxu0 %v1042
  %1185 = vmatpush1.bf16.msra.mxu0 %v1041
  %1186 = vmatprep.subr.bf16.mxu0 %v1050
  %1187 = vmatpush1.bf16.msra.mxu0 %v1049
  %1188 = vmatprep.subr.bf16.mxu0 %v1058
  %1189 = vmatpush1.bf16.msra.mxu0 %v1057
  %1190 = vmatprep.subr.bf16.mxu0 %v1066
  %1191 = vmatpush1.bf16.msra.mxu0 %v1065
  %1192 = vmatprep.subr.bf16.mxu0 0
  %1193 = vmatpush1.bf16.msra.mxu0 0
  %1194 = vmatprep.subr.bf16.mxu0 0
  %1195 = vmatpush1.bf16.msra.mxu0 0
  %1196 = vmatprep.subr.bf16.mxu0 0
  %1197 = vmatpush1.bf16.msra.mxu0 0
  %1198 = vmatprep.subr.bf16.mxu0 0
  %1199 = vmatpush1.bf16.msra.mxu0 0
  %1200 = vmatprep.subr.bf16.mxu0 0
  %1201 = vmatpush1.bf16.msra.mxu0 0
  %1202 = vmatprep.subr.bf16.mxu0 0
  %1203 = vmatpush1.bf16.msra.mxu0 0
  %1204 = vmatprep.subr.bf16.mxu0 0
  %1205 = vmatpush1.bf16.msra.mxu0 0
  %1206 = vmatprep.subr.bf16.mxu0 0
  %1207 = vmatpush1.bf16.msra.mxu0 0
  %1208 = vmatprep.mubr.bf16.mxu0 0
  %1209 = vmatmul.mubr.bf16.gmra.mrb[0].mxu0 %v750
  %v1210 = vpop.f32.mrb[0].mxu0
  %v1211 = vadd.f32 0.0, %v1210
  %v1212 = vpop.f32.mrb[0].mxu0
  %v1213 = vadd.f32 0.0, %v1212
  %v1214 = vpop.f32.mrb[0].mxu0
  %v1215 = vpop.f32.mrb[0].mxu0
  %1216 = vdwg.mxu0
  %1217 = vmatprep.subr.bf16.mxu0 %v1012
  %1218 = vmatpush1.bf16.msra.mxu0 %v1011
  %1219 = vmatprep.subr.bf16.mxu0 %v1020
  %1220 = vmatpush1.bf16.msra.mxu0 %v1019
  %1221 = vmatprep.subr.bf16.mxu0 %v1028
  %1222 = vmatpush1.bf16.msra.mxu0 %v1027
  %1223 = vmatprep.subr.bf16.mxu0 %v1036
  %1224 = vmatpush1.bf16.msra.mxu0 %v1035
  %1225 = vmatprep.subr.bf16.mxu0 %v1044
  %1226 = vmatpush1.bf16.msra.mxu0 %v1043
  %1227 = vmatprep.subr.bf16.mxu0 %v1052
  %1228 = vmatpush1.bf16.msra.mxu0 %v1051
  %1229 = vmatprep.subr.bf16.mxu0 %v1060
  %1230 = vmatpush1.bf16.msra.mxu0 %v1059
  %1231 = vmatprep.subr.bf16.mxu0 %v1068
  %1232 = vmatpush1.bf16.msra.mxu0 %v1067
  %1233 = vmatprep.subr.bf16.mxu0 0
  %1234 = vmatpush1.bf16.msra.mxu0 0
  %1235 = vmatprep.subr.bf16.mxu0 0
  %1236 = vmatpush1.bf16.msra.mxu0 0
  %1237 = vmatprep.subr.bf16.mxu0 0
  %1238 = vmatpush1.bf16.msra.mxu0 0
  %1239 = vmatprep.subr.bf16.mxu0 0
  %1240 = vmatpush1.bf16.msra.mxu0 0
  %1241 = vmatprep.subr.bf16.mxu0 0
  %1242 = vmatpush1.bf16.msra.mxu0 0
  %1243 = vmatprep.subr.bf16.mxu0 0
  %1244 = vmatpush1.bf16.msra.mxu0 0
  %1245 = vmatprep.subr.bf16.mxu0 0
  %1246 = vmatpush1.bf16.msra.mxu0 0
  %1247 = vmatprep.subr.bf16.mxu0 0
  %1248 = vmatpush1.bf16.msra.mxu0 0
  %1249 = vmatprep.mubr.bf16.mxu0 0
  %1250 = vmatmul.mubr.bf16.gmra.mrb[0].mxu0 %v750
  %v1251 = vpop.f32.mrb[0].mxu0
  %v1252 = vadd.f32 0.0, %v1251
  %v1253 = vpop.f32.mrb[0].mxu0
  %v1254 = vadd.f32 0.0, %v1253
  %v1255 = vpop.f32.mrb[0].mxu0
  %v1256 = vpop.f32.mrb[0].mxu0
  %1257 = vdwg.mxu0
  %1258 = vmatprep.subr.bf16.mxu0 %v1014
  %1259 = vmatpush1.bf16.msra.mxu0 %v1013
  %1260 = vmatprep.subr.bf16.mxu0 %v1022
  %1261 = vmatpush1.bf16.msra.mxu0 %v1021
  %1262 = vmatprep.subr.bf16.mxu0 %v1030
  %1263 = vmatpush1.bf16.msra.mxu0 %v1029
  %1264 = vmatprep.subr.bf16.mxu0 %v1038
  %1265 = vmatpush1.bf16.msra.mxu0 %v1037
  %1266 = vmatprep.subr.bf16.mxu0 %v1046
  %1267 = vmatpush1.bf16.msra.mxu0 %v1045
  %1268 = vmatprep.subr.bf16.mxu0 %v1054
  %1269 = vmatpush1.bf16.msra.mxu0 %v1053
  %1270 = vmatprep.subr.bf16.mxu0 %v1062
  %1271 = vmatpush1.bf16.msra.mxu0 %v1061
  %1272 = vmatprep.subr.bf16.mxu0 %v1070
  %1273 = vmatpush1.bf16.msra.mxu0 %v1069
  %1274 = vmatprep.subr.bf16.mxu0 0
  %1275 = vmatpush1.bf16.msra.mxu0 0
  %1276 = vmatprep.subr.bf16.mxu0 0
  %1277 = vmatpush1.bf16.msra.mxu0 0
  %1278 = vmatprep.subr.bf16.mxu0 0
  %1279 = vmatpush1.bf16.msra.mxu0 0
  %1280 = vmatprep.subr.bf16.mxu0 0
  %1281 = vmatpush1.bf16.msra.mxu0 0
  %1282 = vmatprep.subr.bf16.mxu0 0
  %1283 = vmatpush1.bf16.msra.mxu0 0
  %1284 = vmatprep.subr.bf16.mxu0 0
  %1285 = vmatpush1.bf16.msra.mxu0 0
  %1286 = vmatprep.subr.bf16.mxu0 0
  %1287 = vmatpush1.bf16.msra.mxu0 0
  %1288 = vmatprep.subr.bf16.mxu0 0
  %1289 = vmatpush1.bf16.msra.mxu0 0
  %1290 = vmatprep.mubr.bf16.mxu0 0
  %1291 = vmatmul.mubr.bf16.gmra.mrb[0].mxu0 %v750
  %v1292 = vpop.f32.mrb[0].mxu0
  %v1293 = vadd.f32 0.0, %v1292
  %v1294 = vpop.f32.mrb[0].mxu0
  %v1295 = vadd.f32 0.0, %v1294
  %v1296 = vpop.f32.mrb[0].mxu0
  %v1297 = vpop.f32.mrb[0].mxu0
  %1298 = vdwg.mxu0
  %v1307 = vcombine.low %v1170, %v1172
  %v1308 = vcombine.low %v1211, %v1213
  %v1310 = vunpack.c.l.s4 1983009808
  %v1311 = vunpack.c.0.s8 %v1310
  %v1312 = vlaneseq
  %v1313 = vshrl.u32 %v1312, 7
  %v1314 = vsub.s32 %v1311, %v1313
  %v1315 = vrot.slane %v1307, %v1314
  %v1317 = vunpack.c.l.s4 1983009808
  %v1318 = vunpack.c.0.s8 %v1317
  %v1319 = vlaneseq
  %v1320 = vshrl.u32 %v1319, 7
  %v1321 = vsub.s32 %v1318, %v1320
  %v1322 = vrot.slane %v1308, %v1321
  %v1323 = vcombine.low %v1315, %v1322
  %v1324 = vcombine.low %v1252, %v1254
  %v1325 = vcombine.low %v1293, %v1295
  %v1327 = vunpack.c.l.s4 1983009808
  %v1328 = vunpack.c.0.s8 %v1327
  %v1329 = vlaneseq
  %v1330 = vshrl.u32 %v1329, 7
  %v1331 = vsub.s32 %v1328, %v1330
  %v1332 = vrot.slane %v1324, %v1331
  %v1334 = vunpack.c.l.s4 1983009808
  %v1335 = vunpack.c.0.s8 %v1334
  %v1336 = vlaneseq
  %v1337 = vshrl.u32 %v1336, 7
  %v1338 = vsub.s32 %v1335, %v1337
  %v1339 = vrot.slane %v1325, %v1338
  %v1340 = vcombine.low %v1332, %v1339
  %1343 = vst [vmem:[%s6] sm:$0xff] %v1323
  %1344 = vst [vmem:[%s6 + $0x8] sm:$0xff] %v1340
  %v1345 = vld [vmem:[%s1] sm:$0xff]
  %v1346 = vld [vmem:[%s1 + $0x8] sm:$0xff]
  %s1347 = scalar_lea.vmem %s1, 64
  %v1348 = vld [vmem:[%s1347] sm:$0xff]
  %v1349 = vld [vmem:[%s1347 + $0x8] sm:$0xff]
  %v1350 = vld [vmem:[%s2] sm:$0xff]
  %v1351 = vld [vmem:[%s2 + $0x8] sm:$0xff]
  %s1352 = scalar_lea.vmem %s2, 64
  %v1353 = vld [vmem:[%s1352] sm:$0xff]
  %v1354 = vld [vmem:[%s1352 + $0x8] sm:$0xff]
  %v1355 = vmul.f32 %v1345, %v1350
  %v1356 = vmul.f32 %v1346, %v1351
  %v1357 = vadd.f32 %v1355, 0.0
  %v1358 = vadd.f32 %v1356, 0.0
  %v1359 = vmul.f32 %v1348, %v1353
  %v1360 = vmul.f32 %v1349, %v1354
  %v1361 = vsub.f32 %v1357, %v1359
  %v1362 = vsub.f32 %v1358, %v1360
  %v1363 = vmul.f32 %v1345, %v1353
  %v1364 = vmul.f32 %v1346, %v1354
  %v1365 = vadd.f32 %v1363, 0.0
  %v1366 = vadd.f32 %v1364, 0.0
  %v1367 = vmul.f32 %v1348, %v1350
  %v1368 = vmul.f32 %v1349, %v1351
  %v1369 = vadd.f32 %v1365, %v1367
  %v1370 = vadd.f32 %v1366, %v1368
  %s1371 = scalar_lea.vmem %s1, 16
  %v1372 = vld [vmem:[%s1371] sm:$0xff]
  %v1373 = vld [vmem:[%s1371 + $0x8] sm:$0xff]
  %s1374 = scalar_lea.vmem %s1, 80
  %v1375 = vld [vmem:[%s1374] sm:$0xff]
  %v1376 = vld [vmem:[%s1374 + $0x8] sm:$0xff]
  %s1377 = scalar_lea.vmem %s2, 16
  %v1378 = vld [vmem:[%s1377] sm:$0xff]
  %v1379 = vld [vmem:[%s1377 + $0x8] sm:$0xff]
  %s1380 = scalar_lea.vmem %s2, 80
  %v1381 = vld [vmem:[%s1380] sm:$0xff]
  %v1382 = vld [vmem:[%s1380 + $0x8] sm:$0xff]
  %v1383 = vmul.f32 %v1372, %v1378
  %v1384 = vmul.f32 %v1373, %v1379
  %v1385 = vadd.f32 %v1361, %v1383
  %v1386 = vadd.f32 %v1362, %v1384
  %v1387 = vmul.f32 %v1375, %v1381
  %v1388 = vmul.f32 %v1376, %v1382
  %v1389 = vsub.f32 %v1385, %v1387
  %v1390 = vsub.f32 %v1386, %v1388
  %v1391 = vmul.f32 %v1372, %v1381
  %v1392 = vmul.f32 %v1373, %v1382
  %v1393 = vadd.f32 %v1369, %v1391
  %v1394 = vadd.f32 %v1370, %v1392
  %v1395 = vmul.f32 %v1375, %v1378
  %v1396 = vmul.f32 %v1376, %v1379
  %v1397 = vadd.f32 %v1393, %v1395
  %v1398 = vadd.f32 %v1394, %v1396
  %s1399 = scalar_lea.vmem %s1, 32
  %v1400 = vld [vmem:[%s1399] sm:$0xff]
  %v1401 = vld [vmem:[%s1399 + $0x8] sm:$0xff]
  %s1402 = scalar_lea.vmem %s1, 96
  %v1403 = vld [vmem:[%s1402] sm:$0xff]
  %v1404 = vld [vmem:[%s1402 + $0x8] sm:$0xff]
  %s1405 = scalar_lea.vmem %s2, 32
  %v1406 = vld [vmem:[%s1405] sm:$0xff]
  %v1407 = vld [vmem:[%s1405 + $0x8] sm:$0xff]
  %s1408 = scalar_lea.vmem %s2, 96
  %v1409 = vld [vmem:[%s1408] sm:$0xff]
  %v1410 = vld [vmem:[%s1408 + $0x8] sm:$0xff]
  %v1411 = vmul.f32 %v1400, %v1406
  %v1412 = vmul.f32 %v1401, %v1407
  %v1413 = vadd.f32 %v1389, %v1411
  %v1414 = vadd.f32 %v1390, %v1412
  %v1415 = vmul.f32 %v1403, %v1409
  %v1416 = vmul.f32 %v1404, %v1410
  %v1417 = vsub.f32 %v1413, %v1415
  %v1418 = vsub.f32 %v1414, %v1416
  %v1419 = vmul.f32 %v1400, %v1409
  %v1420 = vmul.f32 %v1401, %v1410
  %v1421 = vadd.f32 %v1397, %v1419
  %v1422 = vadd.f32 %v1398, %v1420
  %v1423 = vmul.f32 %v1403, %v1406
  %v1424 = vmul.f32 %v1404, %v1407
  %v1425 = vadd.f32 %v1421, %v1423
  %v1426 = vadd.f32 %v1422, %v1424
  %s1427 = scalar_lea.vmem %s1, 48
  %v1428 = vld [vmem:[%s1427] sm:$0xff]
  %v1429 = vld [vmem:[%s1427 + $0x8] sm:$0xff]
  %s1430 = scalar_lea.vmem %s1, 112
  %v1431 = vld [vmem:[%s1430] sm:$0xff]
  %v1432 = vld [vmem:[%s1430 + $0x8] sm:$0xff]
  %s1433 = scalar_lea.vmem %s2, 48
  %v1434 = vld [vmem:[%s1433] sm:$0xff]
  %v1435 = vld [vmem:[%s1433 + $0x8] sm:$0xff]
  %s1436 = scalar_lea.vmem %s2, 112
  %v1437 = vld [vmem:[%s1436] sm:$0xff]
  %v1438 = vld [vmem:[%s1436 + $0x8] sm:$0xff]
  %v1439 = vmul.f32 %v1428, %v1434
  %v1440 = vmul.f32 %v1429, %v1435
  %v1441 = vadd.f32 %v1417, %v1439
  %v1442 = vadd.f32 %v1418, %v1440
  %v1443 = vmul.f32 %v1431, %v1437
  %v1444 = vmul.f32 %v1432, %v1438
  %v1445 = vsub.f32 %v1441, %v1443
  %v1446 = vsub.f32 %v1442, %v1444
  %v1447 = vmul.f32 %v1428, %v1437
  %v1448 = vmul.f32 %v1429, %v1438
  %v1449 = vadd.f32 %v1425, %v1447
  %v1450 = vadd.f32 %v1426, %v1448
  %v1451 = vmul.f32 %v1431, %v1434
  %v1452 = vmul.f32 %v1432, %v1435
  %v1453 = vadd.f32 %v1449, %v1451
  %v1454 = vadd.f32 %v1450, %v1452
  %1455 = vst [vmem:[%s5] sm:$0xff] %v1445
  %1456 = vst [vmem:[%s5 + $0x8] sm:$0xff] %v1446
  %1457 = vst [vmem:[%s5 + $0x10] sm:$0xff] %v1453
  %1458 = vst [vmem:[%s5 + $0x18] sm:$0xff] %v1454
  // Predicated region
  $region22: #{pr2d_forward_pallas.1} parent=0 // pred_check
    _
  $region23: #{pr2d_forward_pallas.1} parent=0 // pred_check_branch
    %1460 = sbr.rel (0) target = $region25
  $region24: #{pr2d_forward_pallas.1} parent=0 // pred_region
    _
  $region25: #{pr2d_forward_pallas.1} parent=0 // pred_fallthru
    _
  // Predicated region
  $region26: #{pr2d_forward_pallas.1} parent=0 // pred_check
    _
  $region27: #{pr2d_forward_pallas.1} parent=0 // pred_check_branch
    %1462 = sbr.rel (0) target = $region29
  $region28: #{pr2d_forward_pallas.1} parent=0 // pred_region
    _
  $region29: #{pr2d_forward_pallas.1} parent=0 // pred_fallthru
    _
  // Predicated region
  $region30: #{pr2d_forward_pallas.1} parent=0 // pred_check
    _
  $region31: #{pr2d_forward_pallas.1} parent=0 // pred_check_branch
    %1464 = sbr.rel (0) target = $region33
  $region32: #{pr2d_forward_pallas.1} parent=0 // pred_region
    _
  $region33: #{pr2d_forward_pallas.1} parent=0 // pred_fallthru
    _
  // Predicated region
  $region34: #{pr2d_forward_pallas.1} parent=0 // pred_check
    _
  $region35: #{pr2d_forward_pallas.1} parent=0 // pred_check_branch
    %1466 = sbr.rel (0) target = $region37
  $region36: #{pr2d_forward_pallas.1} parent=0 // pred_region
    _
  $region37: #{pr2d_forward_pallas.1} parent=0 // pred_fallthru
    _

</llo_original>
